<compile_context>
chip_gen: v6e
topology: v6e:2x2x1
jax: 0.10.0
libtpu: 0.0.40
codegen_flags: <defaults>
</compile_context>

<pallas_src>
import functools

import jax
import jax.numpy as jnp
from jax import lax
from jax.experimental import pallas as pl
from jax.experimental.pallas import tpu as pltpu


def _round_up(x, m):
    return ((x + m - 1) // m) * m


def _mlp_block_kernel(x_ref, g_ref, bt_ref, w1_ref, b1_ref, w2_ref, b2_ref,
                      o_ref, *, d_real, eps, approximate_gelu):
    x = x_ref[...].astype(jnp.float32)                      # [tile_m, Dp], f32

    # ---- LayerNorm over the real (unpadded) feature count -------------------
    # Padded lanes of x are exactly zero, so both sums below already equal the
    # real-lane sums; no lane mask / iota needed.
    inv_d = jnp.float32(1.0 / d_real)
    mean = jnp.sum(x, axis=-1, keepdims=True) * inv_d
    ex2 = jnp.sum(x * x, axis=-1, keepdims=True) * inv_d
    var = jnp.maximum(ex2 - mean * mean, 0.0)
    xn = (x - mean) * lax.rsqrt(var + jnp.float32(eps))
    xn = xn * g_ref[...] + bt_ref[...]                      # padded gamma/beta are 0

    # ---- fc1 (bf16 MXU, f32 accumulation) + GELU in f32 ----------------------
    h = jnp.dot(xn.astype(jnp.bfloat16), w1_ref[...],
                preferred_element_type=jnp.float32) + b1_ref[...]
    if approximate_gelu:
        h = jax.nn.gelu(h, approximate=True)                # tanh -> EUP slot
    else:
        h = 0.5 * h * (1.0 + lax.erf(h * jnp.float32(0.7071067811865476)))
    # TODO(synk): nn.Dropout(mlp_dropout) is identity at inference; omitted.

    # ---- fc2 (bf16 MXU) + residual add ---------------------------------------
    o = jnp.dot(h.astype(jnp.bfloat16), w2_ref[...],
                preferred_element_type=jnp.float32) + b2_ref[...]
    o_ref[...] = (x + o).astype(o_ref.dtype)


def prepare_mlp_block_params(gamma, beta, w1, b1, w2, b2):
    """Pad/cast parameters ONCE (they are constants across calls).

    w1: [D, H]; w2: [H, D] (transposed w.r.t. PyTorch's nn.Linear weight layout).
    Feature dims are zero-padded to lane multiples (128) so both matmuls are
    lane-dense; padded gamma/beta/weights/bias rows & cols are zero, so the
    padding is mathematically inert.
    """
    D, H = w1.shape
    assert w2.shape == (H, D) and gamma.shape == (D,) and beta.shape == (D,)
    assert b1.shape == (H,) and b2.shape == (D,)
    Dp = _round_up(D, 128)
    Hp = _round_up(H, 128)

    f32, bf16 = jnp.float32, jnp.bfloat16
    gp = jnp.zeros((1, Dp), f32).at[0, :D].set(gamma.astype(f32))
    btp = jnp.zeros((1, Dp), f32).at[0, :D].set(beta.astype(f32))
    w1p = jnp.zeros((Dp, Hp), bf16).at[:D, :H].set(w1.astype(bf16))
    b1p = jnp.zeros((1, Hp), f32).at[0, :H].set(b1.astype(f32))
    w2p = jnp.zeros((Hp, Dp), bf16).at[:H, :D].set(w2.astype(bf16))
    b2p = jnp.zeros((1, Dp), f32).at[0, :D].set(b2.astype(f32))
    return {"gamma": gp, "beta": btp, "w1": w1p, "b1": b1p, "w2": w2p, "b2": b2p,
            "D": D, "H": H, "Dp": Dp, "Hp": Hp}


def mlp_block_forward(x, params, *, eps=1e-5, tile_m=256, approximate_gelu=False):
    """x: [..., D]. Returns x + Linear2(GELU(Linear1(LayerNorm(x))))."""
    D, Dp, Hp = params["D"], params["Dp"], params["Hp"]
    orig_shape = x.shape
    assert orig_shape[-1] == D

    x2 = x.reshape(-1, D)
    M = x2.shape[0]
    itemsize = jnp.dtype(x.dtype).itemsize
    sub = 8 if itemsize >= 4 else (16 if itemsize == 2 else 32)

    # Row tiling: minimize row padding, and give >=2 blocks (when there are
    # enough rows) so the "parallel" axis can shard across v7x's 2 TensorCores.
    if M <= 2 * sub:
        n_blocks = 1
    else:
        n_blocks = max(pl.cdiv(M, tile_m), 2)
    tm = _round_up(pl.cdiv(M, n_blocks), sub)
    Mp = _round_up(M, tm)

    # Only materialize a padded activation copy when actually needed.
    need_pad = (Dp != D) or (Mp != M)
    if need_pad:
        xp = jnp.zeros((Mp, Dp), x.dtype).at[:M, :D].set(x2)
    else:
        xp = x2

    grid = (Mp // tm,)

    # VMEM budget: double-buffered x/out tiles (native dtype) + single-buffered
    # bf16 weights + f32 working set + headroom; cap at ~85% of physical VMEM.
    w_bytes = (Dp * Hp + Hp * Dp) * 2
    act_bytes = 2 * 2 * tm * Dp * itemsize
    work_bytes = tm * (Hp + 3 * Dp) * 4
    vmem_est = w_bytes + act_bytes + work_bytes + (4 << 20)
    try:
        vmem_cap = pltpu.get_tpu_info().vmem_capacity_bytes
    except Exception:
        vmem_cap = 64 << 20
    vmem_limit = int(min(max(vmem_est, 16 << 20), int(0.85 * vmem_cap)))
    # TODO(synk): for very large D/H where the bf16 weights exceed ~70% of VMEM
    # (v7x 64 MiB), add an "arbitrary" Hp-tiled grid axis with an fc2 f32
    # accumulator instead of keeping both full weight matrices resident.

    flops = 2 * Mp * (Dp * Hp + Hp * Dp)
    bytes_accessed = (xp.size * itemsize + Mp * Dp * itemsize
                      + w_bytes + (2 * Dp + Hp) * 4 + 2 * Dp * 4)

    kernel = functools.partial(_mlp_block_kernel, d_real=D, eps=eps,
                               approximate_gelu=approximate_gelu)
    const_mode = pl.Buffered(1)   # never-changing blocks: no double-buffering

    out = pl.pallas_call(
        kernel,
        out_shape=jax.ShapeDtypeStruct((Mp, Dp), x.dtype),
        grid_spec=pltpu.PrefetchScalarGridSpec(
            num_scalar_prefetch=0,
            grid=grid,
            in_specs=[
                pl.BlockSpec((tm, Dp), lambda i: (i, 0)),                 # x tiles
                pl.BlockSpec((1, Dp), lambda i: (0, 0), pipeline_mode=const_mode),   # gamma
                pl.BlockSpec((1, Dp), lambda i: (0, 0), pipeline_mode=const_mode),   # beta
                pl.BlockSpec((Dp, Hp), lambda i: (0, 0), pipeline_mode=const_mode),  # W1
                pl.BlockSpec((1, Hp), lambda i: (0, 0), pipeline_mode=const_mode),   # b1
                pl.BlockSpec((Hp, Dp), lambda i: (0, 0), pipeline_mode=const_mode),  # W2
                pl.BlockSpec((1, Dp), lambda i: (0, 0), pipeline_mode=const_mode),   # b2
            ],
            out_specs=pl.BlockSpec((tm, Dp), lambda i: (i, 0)),
        ),
        compiler_params=pltpu.CompilerParams(
            dimension_semantics=("parallel",),              # megacore row sharding
            vmem_limit_bytes=vmem_limit,
        ),
        cost_estimate=pl.CostEstimate(
            flops=flops, transcendentals=Mp * Hp, bytes_accessed=bytes_accessed),
    )(xp, params["gamma"], params["beta"], params["w1"], params["b1"],
      params["w2"], params["b2"])

    if need_pad:
        out = out[:M, :D]
    return out.reshape(orig_shape)


if __name__ == "__main__":
    # Small shapes implied by the module: batch=2, seq=8, embedding_dims=32, mlp_size=64.
    batch, seq = 2, 8
    embedding_dims, mlp_size = 32, 64

    key = jax.random.PRNGKey(0)
    kx, kg, kb, k1, kb1, k2, kb2 = jax.random.split(key, 7)

    x = jax.random.normal(kx, (batch, seq, embedding_dims), dtype=jnp.float32)
    gamma = 1.0 + 0.1 * jax.random.normal(kg, (embedding_dims,), jnp.float32)
    beta = 0.1 * jax.random.normal(kb, (embedding_dims,), jnp.float32)

    lim1 = 1.0 / (embedding_dims ** 0.5)
    w1 = jax.random.uniform(k1, (embedding_dims, mlp_size), jnp.float32, -lim1, lim1)
    b1 = jax.random.uniform(kb1, (mlp_size,), jnp.float32, -lim1, lim1)
    lim2 = 1.0 / (mlp_size ** 0.5)
    w2 = jax.random.uniform(k2, (mlp_size, embedding_dims), jnp.float32, -lim2, lim2)
    b2 = jax.random.uniform(kb2, (embedding_dims,), jnp.float32, -lim2, lim2)

    params = prepare_mlp_block_params(gamma, beta, w1, b1, w2, b2)  # pad/cast once
    out = mlp_block_forward(x, params)
    jax.block_until_ready(out)

    # Pure-JAX f32 reference: x + fc2(GELU(fc1(LayerNorm(x)))).
    mean = jnp.mean(x, axis=-1, keepdims=True)
    var = jnp.mean((x - mean) ** 2, axis=-1, keepdims=True)
    xn = (x - mean) / jnp.sqrt(var + 1e-5) * gamma + beta
    h = xn @ w1 + b1
    h = 0.5 * h * (1.0 + lax.erf(h / jnp.sqrt(2.0)))
    ref = x + (h @ w2 + b2)

    # bf16 MXU operands with f32 accumulation -> loosened tolerance vs f32 reference.
    assert jnp.allclose(out, ref, atol=3e-2, rtol=3e-2), "mismatch vs reference"
    print("KERNEL_OK")
</pallas_src>

<mosaic_0001>
module attributes {stable_mosaic.version = 11 : i64} {
  func.func @_mlp_block_kernel(%arg0: i32, %arg1: memref<16x128xf32, #tpu.memory_space<vmem>>, %arg2: memref<1x128xf32, #tpu.memory_space<vmem>>, %arg3: memref<1x128xf32, #tpu.memory_space<vmem>>, %arg4: memref<128x128xbf16, #tpu.memory_space<vmem>>, %arg5: memref<1x128xf32, #tpu.memory_space<vmem>>, %arg6: memref<128x128xbf16, #tpu.memory_space<vmem>>, %arg7: memref<1x128xf32, #tpu.memory_space<vmem>>, %arg8: memref<16x128xf32, #tpu.memory_space<vmem>>) attributes {dimension_semantics = [#tpu.dimension_semantics<parallel>], iteration_bounds = array<i64: 1>, scalar_prefetch = 0 : i64, scratch_operands = 0 : i64, tpu.core_type = #tpu.core_type<tc>, window_params = [{transform_indices = @transform_0, window_bounds = array<i64: 16, 128>}, {pipeline_mode = #tpu.pipeline_mode<synchronous>, transform_indices = @transform_1, window_bounds = array<i64: 1, 128>}, {pipeline_mode = #tpu.pipeline_mode<synchronous>, transform_indices = @transform_2, window_bounds = array<i64: 1, 128>}, {pipeline_mode = #tpu.pipeline_mode<synchronous>, transform_indices = @transform_3, window_bounds = array<i64: 128, 128>}, {pipeline_mode = #tpu.pipeline_mode<synchronous>, transform_indices = @transform_4, window_bounds = array<i64: 1, 128>}, {pipeline_mode = #tpu.pipeline_mode<synchronous>, transform_indices = @transform_5, window_bounds = array<i64: 128, 128>}, {pipeline_mode = #tpu.pipeline_mode<synchronous>, transform_indices = @transform_6, window_bounds = array<i64: 1, 128>}, {transform_indices = @transform_7, window_bounds = array<i64: 16, 128>}]} {
    %c0 = arith.constant 0 : index
    %c0_0 = arith.constant 0 : index
    %0 = vector.load %arg1[%c0, %c0_0] : memref<16x128xf32, #tpu.memory_space<vmem>>, vector<16x128xf32>
    %cst = arith.constant dense<0.000000e+00> : vector<16xf32>
    %1 = vector.multi_reduction <add>, %0, %cst [1] : vector<16x128xf32> to vector<16xf32>
    %2 = vector.shape_cast %1 : vector<16xf32> to vector<16x1xf32>
    %cst_1 = arith.constant 3.125000e-02 : f32
    %3 = vector.broadcast %cst_1 : f32 to vector<16x1xf32>
    %4 = arith.mulf %2, %3 : vector<16x1xf32>
    %5 = arith.mulf %0, %0 : vector<16x128xf32>
    %cst_2 = arith.constant dense<0.000000e+00> : vector<16xf32>
    %6 = vector.multi_reduction <add>, %5, %cst_2 [1] : vector<16x128xf32> to vector<16xf32>
    %7 = vector.shape_cast %6 : vector<16xf32> to vector<16x1xf32>
    %cst_3 = arith.constant 3.125000e-02 : f32
    %8 = vector.broadcast %cst_3 : f32 to vector<16x1xf32>
    %9 = arith.mulf %7, %8 : vector<16x1xf32>
    %10 = arith.mulf %4, %4 : vector<16x1xf32>
    %11 = arith.subf %9, %10 : vector<16x1xf32>
    %cst_4 = arith.constant 0.000000e+00 : f32
    %12 = vector.broadcast %cst_4 : f32 to vector<16x1xf32>
    %13 = arith.maximumf %11, %12 : vector<16x1xf32>
    %14 = vector.broadcast %4 : vector<16x1xf32> to vector<16x128xf32>
    %15 = arith.subf %0, %14 : vector<16x128xf32>
    %cst_5 = arith.constant 9.99999974E-6 : f32
    %16 = vector.broadcast %cst_5 : f32 to vector<16x1xf32>
    %17 = arith.addf %13, %16 : vector<16x1xf32>
    %18 = math.rsqrt %17 : vector<16x1xf32>
    %19 = vector.broadcast %18 : vector<16x1xf32> to vector<16x128xf32>
    %20 = arith.mulf %15, %19 : vector<16x128xf32>
    %c0_6 = arith.constant 0 : index
    %c0_7 = arith.constant 0 : index
    %21 = vector.load %arg2[%c0_6, %c0_7] : memref<1x128xf32, #tpu.memory_space<vmem>>, vector<1x128xf32>
    %22 = vector.broadcast %21 : vector<1x128xf32> to vector<16x128xf32>
    %23 = arith.mulf %20, %22 : vector<16x128xf32>
    %c0_8 = arith.constant 0 : index
    %c0_9 = arith.constant 0 : index
    %24 = vector.load %arg3[%c0_8, %c0_9] : memref<1x128xf32, #tpu.memory_space<vmem>>, vector<1x128xf32>
    %25 = vector.broadcast %24 : vector<1x128xf32> to vector<16x128xf32>
    %26 = arith.addf %23, %25 : vector<16x128xf32>
    %27 = arith.truncf %26 : vector<16x128xf32> to vector<16x128xbf16>
    %c0_10 = arith.constant 0 : index
    %c0_11 = arith.constant 0 : index
    %28 = vector.load %arg4[%c0_10, %c0_11] : memref<128x128xbf16, #tpu.memory_space<vmem>>, vector<128x128xbf16>
    %cst_12 = arith.constant dense<0.000000e+00> : vector<16x128xf32>
    %29 = tpu.matmul %27, %28, %cst_12 {dimension_numbers = #tpu.dot_dimension_numbers<[1], [0], [0], [1], [0, 0, 1, 1], [], []>} : vector<16x128xbf16>, vector<128x128xbf16>, vector<16x128xf32> -> vector<16x128xf32>
    %c0_13 = arith.constant 0 : index
    %c0_14 = arith.constant 0 : index
    %30 = vector.load %arg5[%c0_13, %c0_14] : memref<1x128xf32, #tpu.memory_space<vmem>>, vector<1x128xf32>
    %31 = vector.broadcast %30 : vector<1x128xf32> to vector<16x128xf32>
    %32 = arith.addf %29, %31 : vector<16x128xf32>
    %cst_15 = arith.constant 5.000000e-01 : f32
    %33 = vector.broadcast %cst_15 : f32 to vector<16x128xf32>
    %34 = arith.mulf %33, %32 : vector<16x128xf32>
    %cst_16 = arith.constant 0.707106769 : f32
    %35 = vector.broadcast %cst_16 : f32 to vector<16x128xf32>
    %36 = arith.mulf %32, %35 : vector<16x128xf32>
    %37 = math.erf %36 : vector<16x128xf32>
    %cst_17 = arith.constant 1.000000e+00 : f32
    %38 = vector.broadcast %cst_17 : f32 to vector<16x128xf32>
    %39 = arith.addf %38, %37 : vector<16x128xf32>
    %40 = arith.mulf %34, %39 : vector<16x128xf32>
    %41 = arith.truncf %40 : vector<16x128xf32> to vector<16x128xbf16>
    %c0_18 = arith.constant 0 : index
    %c0_19 = arith.constant 0 : index
    %42 = vector.load %arg6[%c0_18, %c0_19] : memref<128x128xbf16, #tpu.memory_space<vmem>>, vector<128x128xbf16>
    %cst_20 = arith.constant dense<0.000000e+00> : vector<16x128xf32>
    %43 = tpu.matmul %41, %42, %cst_20 {dimension_numbers = #tpu.dot_dimension_numbers<[1], [0], [0], [1], [0, 0, 1, 1], [], []>} : vector<16x128xbf16>, vector<128x128xbf16>, vector<16x128xf32> -> vector<16x128xf32>
    %c0_21 = arith.constant 0 : index
    %c0_22 = arith.constant 0 : index
    %44 = vector.load %arg7[%c0_21, %c0_22] : memref<1x128xf32, #tpu.memory_space<vmem>>, vector<1x128xf32>
    %45 = vector.broadcast %44 : vector<1x128xf32> to vector<16x128xf32>
    %46 = arith.addf %43, %45 : vector<16x128xf32>
    %47 = arith.addf %0, %46 : vector<16x128xf32>
    %c0_23 = arith.constant 0 : index
    %c0_24 = arith.constant 0 : index
    %48 = vector.load %arg8[%c0_23, %c0_24] : memref<16x128xf32, #tpu.memory_space<vmem>>, vector<16x128xf32>
    tpu.vector_store %arg8[%c0_23, %c0_24], %47 {strides = array<i32>} : memref<16x128xf32, #tpu.memory_space<vmem>>, vector<16x128xf32>,
    return
  }
  func.func @transform_0(%arg0: i32) -> (i32, i32) {
    %c0_i32 = arith.constant 0 : i32
    %c0_i32_0 = arith.constant 0 : i32
    return %arg0, %c0_i32 : i32, i32
  }
  func.func @transform_1(%arg0: i32) -> (i32, i32) {
    %c0_i32 = arith.constant 0 : i32
    %c0_i32_0 = arith.constant 0 : i32
    %c0_i32_1 = arith.constant 0 : i32
    return %c0_i32, %c0_i32_0 : i32, i32
  }
  func.func @transform_2(%arg0: i32) -> (i32, i32) {
    %c0_i32 = arith.constant 0 : i32
    %c0_i32_0 = arith.constant 0 : i32
    %c0_i32_1 = arith.constant 0 : i32
    return %c0_i32, %c0_i32_0 : i32, i32
  }
  func.func @transform_3(%arg0: i32) -> (i32, i32) {
    %c0_i32 = arith.constant 0 : i32
    %c0_i32_0 = arith.constant 0 : i32
    %c0_i32_1 = arith.constant 0 : i32
    return %c0_i32, %c0_i32_0 : i32, i32
  }
  func.func @transform_4(%arg0: i32) -> (i32, i32) {
    %c0_i32 = arith.constant 0 : i32
    %c0_i32_0 = arith.constant 0 : i32
    %c0_i32_1 = arith.constant 0 : i32
    return %c0_i32, %c0_i32_0 : i32, i32
  }
  func.func @transform_5(%arg0: i32) -> (i32, i32) {
    %c0_i32 = arith.constant 0 : i32
    %c0_i32_0 = arith.constant 0 : i32
    %c0_i32_1 = arith.constant 0 : i32
    return %c0_i32, %c0_i32_0 : i32, i32
  }
  func.func @transform_6(%arg0: i32) -> (i32, i32) {
    %c0_i32 = arith.constant 0 : i32
    %c0_i32_0 = arith.constant 0 : i32
    %c0_i32_1 = arith.constant 0 : i32
    return %c0_i32, %c0_i32_0 : i32, i32
  }
  func.func @transform_7(%arg0: i32) -> (i32, i32) {
    %c0_i32 = arith.constant 0 : i32
    %c0_i32_0 = arith.constant 0 : i32
    return %arg0, %c0_i32 : i32, i32
  }
}

</mosaic_0001>

<llo_original>
// kernel: tpu_custom_call.1
$region0: #{tpu_custom_call.1}
  #allocation0 [shape = 'u32[]', space=smem, size = 0x4, offset = 0x4, fixed_abs, tag = 'smem constant byte address 0x4 - core index']
  #allocation1 [shape = 'u32[144,128]{1,0:T(1,128)}', space=vmem, size = 0x12000, scoped, tag = 'internal scratch']
  %s0 = inlined_call_operand.hbm [shape: f32[16,128], index: 0, kind: input, shape index: {}]
  %s1 = inlined_call_operand.vmem [shape: f32[1,128], index: 1, kind: input, shape index: {}]
  %s2 = inlined_call_operand.vmem [shape: f32[1,128], index: 2, kind: input, shape index: {}]
  %s3 = inlined_call_operand.hbm [shape: bf16[128,128], index: 3, kind: input, shape index: {}]
  %s4 = inlined_call_operand.vmem [shape: f32[1,128], index: 4, kind: input, shape index: {}]
  %s5 = inlined_call_operand.hbm [shape: bf16[128,128], index: 5, kind: input, shape index: {}]
  %s6 = inlined_call_operand.vmem [shape: f32[1,128], index: 6, kind: input, shape index: {}]
  %s7 = inlined_call_operand.hbm [shape: f32[16,128], index: 7, kind: output, shape index: {}]
  %s8 = sld [smem:[#allocation0]]
  $region50: #{tpu_custom_call.1} parent=0
    _
  %s10 = ssub.s32 1, %s8
  %s11 = scalar_select 0, %s10, %s8
  $region1: #{tpu_custom_call.1} parent=0
    #allocation2 [shape = 'u8[8192]{0}', space=vmem, size = 0x2000, scoped, tag = 'input window, operand 0, single buffered']
    #allocation3 [shape = 's32[1]{0}', space=sflag, size = 0x4, scoped, tag = 'scoped memory for tpu_custom_call.1']
    #allocation4 [shape = 's32[1]{0}', space=sflag, size = 0x4, scoped, tag = 'scoped memory for tpu_custom_call.1']
    #allocation5 [shape = 'u8[32768]{0}', space=vmem, size = 0x8000, scoped, tag = 'input window, operand 3, single buffered']
    #allocation6 [shape = 's32[1]{0}', space=sflag, size = 0x4, scoped, tag = 'scoped memory for tpu_custom_call.1']
    #allocation7 [shape = 'u8[32768]{0}', space=vmem, size = 0x8000, scoped, tag = 'input window, operand 5, single buffered']
    #allocation8 [shape = 'u8[8192]{0}', space=vmem, size = 0x2000, scoped, tag = 'output window, operand 0, single buffered']
    %12 = vsyncpa [#allocation3], 0
    %13 = vsyncpa [#allocation6], 0
    %14 = vsyncpa [#allocation4], 0
    // Predicated region
    $region2: #{tpu_custom_call.1} parent=1 // pred_check
      _
    $region3: #{tpu_custom_call.1} parent=1 // pred_check_branch
      %16 = sbr.rel (0) target = $region5
    $region4: #{tpu_custom_call.1} parent=1 // pred_region
      %s18 = ssub.s32 256, 256
      %19 = vsyncadd [#allocation3], %s18
      %s20 = sshll.u32 [#allocation2], 4
      %s21 = int_to_ptr.vmem [resolvable:$true] %s20
      %26 = dma.hbm_to_vmem [thread:$0]  %s0, 256, %s21, [#allocation3], 128, 128, 8
    $region5: #{tpu_custom_call.1} parent=1 // pred_fallthru
      _
    // Predicated region
    $region6: #{tpu_custom_call.1} parent=1 // pred_check
      _
    $region7: #{tpu_custom_call.1} parent=1 // pred_check_branch
      %28 = sbr.rel (0) target = $region9
    $region8: #{tpu_custom_call.1} parent=1 // pred_region
      _
    $region9: #{tpu_custom_call.1} parent=1 // pred_fallthru
      _
    // Predicated region
    $region10: #{tpu_custom_call.1} parent=1 // pred_check
      _
    $region11: #{tpu_custom_call.1} parent=1 // pred_check_branch
      %30 = sbr.rel (0) target = $region13
    $region12: #{tpu_custom_call.1} parent=1 // pred_region
      _
    $region13: #{tpu_custom_call.1} parent=1 // pred_fallthru
      _
    // Predicated region
    $region14: #{tpu_custom_call.1} parent=1 // pred_check
      _
    $region15: #{tpu_custom_call.1} parent=1 // pred_check_branch
      %32 = sbr.rel (0) target = $region17
    $region16: #{tpu_custom_call.1} parent=1 // pred_region
      %s34 = ssub.s32 1024, 1024
      %35 = vsyncadd [#allocation6], %s34
      %s36 = sshll.u32 [#allocation5], 4
      %s37 = int_to_ptr.vmem [resolvable:$true] %s36
      %42 = dma.hbm_to_vmem [thread:$0]  %s3, 1024, %s37, [#allocation6], 64, 64, 4
    $region17: #{tpu_custom_call.1} parent=1 // pred_fallthru
      _
    // Predicated region
    $region18: #{tpu_custom_call.1} parent=1 // pred_check
      _
    $region19: #{tpu_custom_call.1} parent=1 // pred_check_branch
      %44 = sbr.rel (0) target = $region21
    $region20: #{tpu_custom_call.1} parent=1 // pred_region
      _
    $region21: #{tpu_custom_call.1} parent=1 // pred_fallthru
      _
    // Predicated region
    $region22: #{tpu_custom_call.1} parent=1 // pred_check
      _
    $region23: #{tpu_custom_call.1} parent=1 // pred_check_branch
      %46 = sbr.rel (0) target = $region25
    $region24: #{tpu_custom_call.1} parent=1 // pred_region
      %s48 = ssub.s32 1024, 1024
      %49 = vsyncadd [#allocation6], %s48
      %s50 = sshll.u32 [#allocation7], 4
      %s51 = int_to_ptr.vmem [resolvable:$true] %s50
      %56 = dma.hbm_to_vmem [thread:$0]  %s5, 1024, %s51, [#allocation6], 64, 64, 4
    $region25: #{tpu_custom_call.1} parent=1 // pred_fallthru
      _
    // Predicated region
    $region26: #{tpu_custom_call.1} parent=1 // pred_check
      _
    $region27: #{tpu_custom_call.1} parent=1 // pred_check_branch
      %58 = sbr.rel (0) target = $region29
    $region28: #{tpu_custom_call.1} parent=1 // pred_region
      _
    $region29: #{tpu_custom_call.1} parent=1 // pred_fallthru
      _
    // Predicated region
    $region30: #{tpu_custom_call.1} parent=1 // pred_check
      _
    $region31: #{tpu_custom_call.1} parent=1 // pred_check_branch
      %60 = sbr.rel (0) target = $region33
    $region32: #{tpu_custom_call.1} parent=1 // pred_region
      %61 = dma.done [#allocation3], 256
    $region33: #{tpu_custom_call.1} parent=1 // pred_fallthru
      _
    // Predicated region
    $region34: #{tpu_custom_call.1} parent=1 // pred_check
      _
    $region35: #{tpu_custom_call.1} parent=1 // pred_check_branch
      %63 = sbr.rel (0) target = $region37
    $region36: #{tpu_custom_call.1} parent=1 // pred_region
      %64 = dma.done [#allocation6], 1024
    $region37: #{tpu_custom_call.1} parent=1 // pred_fallthru
      _
    // Predicated region
    $region38: #{tpu_custom_call.1} parent=1 // pred_check
      _
    $region39: #{tpu_custom_call.1} parent=1 // pred_check_branch
      %66 = sbr.rel (0) target = $region41
    $region40: #{tpu_custom_call.1} parent=1 // pred_region
      %67 = dma.done [#allocation6], 1024
    $region41: #{tpu_custom_call.1} parent=1 // pred_fallthru
      _
    %v69 = vld [vmem:[#allocation2] sm:$0xff]
    %v70 = vld [vmem:[#allocation2 + $0x8] sm:$0xff]
    %71 = vadd.xlane.f32.xlu0 %v69
    %v72 = vpop.xlane.xlu0 %71
    %73 = vadd.xlane.f32.xlu0 %v70
    %v74 = vpop.xlane.xlu0 %73
    %v75 = vmul.f32 %v72, 0.03125
    %v76 = vmul.f32 %v74, 0.03125
    %v77 = vmul.f32 %v69, %v69
    %v78 = vmul.f32 %v70, %v70
    %79 = vadd.xlane.f32.xlu0 %v77
    %v80 = vpop.xlane.xlu0 %79
    %81 = vadd.xlane.f32.xlu0 %v78
    %v82 = vpop.xlane.xlu0 %81
    %v83 = vmul.f32 %v80, 0.03125
    %v84 = vmul.f32 %v82, 0.03125
    %v85 = vmul.f32 %v75, %v75
    %v86 = vmul.f32 %v76, %v76
    %v87 = vsub.f32 %v83, %v85
    %v88 = vsub.f32 %v84, %v86
    %v89 = vmax.f32 %v87, 0.0
    %v90 = vmax.f32 %v88, 0.0
    %v91 = vsub.f32 %v69, %v75
    %v92 = vsub.f32 %v70, %v76
    %v93 = vadd.f32 %v89, 1e-05
    %v94 = vadd.f32 %v90, 1e-05
    %v95 = vrsqrt.pop %v93
    %v96 = vrsqrt.pop %v94
    %v97 = vmul.f32 %v91, %v95
    %v98 = vmul.f32 %v92, %v96
    %v99 = vld [vmem:[%s1] sm:$0x1]
    %v101 = vlaneseq
    %v102 = vshrl.u32 %v101, 7
    %v103 = vsub.s32 0, %v102
    %v104 = vrot.slane %v99, %v103
    %v106 = vmul.f32 %v97, %v104
    %v107 = vmul.f32 %v98, %v104
    %v108 = vld [vmem:[%s2] sm:$0x1]
    %v110 = vlaneseq
    %v111 = vshrl.u32 %v110, 7
    %v112 = vsub.s32 0, %v111
    %v113 = vrot.slane %v108, %v112
    %v115 = vadd.f32 %v106, %v113
    %v116 = vadd.f32 %v107, %v113
    %v117 = vpack.c.bf16 %v116, %v115
    %v118 = vld [vmem:[#allocation5] sm:$0xf]
    %v119 = vld [vmem:[#allocation5 + $0x4] sm:$0xf]
    %v120 = vld [vmem:[#allocation5 + $0x8] sm:$0xf]
    %v121 = vld [vmem:[#allocation5 + $0xc] sm:$0xf]
    %v122 = vld [vmem:[#allocation5 + $0x10] sm:$0xf]
    %v123 = vld [vmem:[#allocation5 + $0x14] sm:$0xf]
    %v124 = vld [vmem:[#allocation5 + $0x18] sm:$0xf]
    %v125 = vld [vmem:[#allocation5 + $0x1c] sm:$0xf]
    %v126 = vld [vmem:[#allocation5 + $0x20] sm:$0xf]
    %v127 = vld [vmem:[#allocation5 + $0x24] sm:$0xf]
    %v128 = vld [vmem:[#allocation5 + $0x28] sm:$0xf]
    %v129 = vld [vmem:[#allocation5 + $0x2c] sm:$0xf]
    %v130 = vld [vmem:[#allocation5 + $0x30] sm:$0xf]
    %v131 = vld [vmem:[#allocation5 + $0x34] sm:$0xf]
    %v132 = vld [vmem:[#allocation5 + $0x38] sm:$0xf]
    %v133 = vld [vmem:[#allocation5 + $0x3c] sm:$0xf]
    %v134 = vld [vmem:[%s4] sm:$0x1]
    %v136 = vlaneseq
    %v137 = vshrl.u32 %v136, 7
    %v138 = vsub.s32 0, %v137
    %v139 = vrot.slane %v134, %v138
    %v157 = vunpack.c.l.b16 %v118
    %v158 = vunpack.c.l.b16 %v119
    %v159 = vunpack.c.l.b16 %v120
    %v160 = vunpack.c.l.b16 %v121
    %v161 = vunpack.c.l.b16 %v122
    %v162 = vunpack.c.l.b16 %v123
    %v163 = vunpack.c.l.b16 %v124
    %v164 = vunpack.c.l.b16 %v125
    %v165 = vunpack.c.l.b16 %v126
    %v166 = vunpack.c.l.b16 %v127
    %v167 = vunpack.c.l.b16 %v128
    %v168 = vunpack.c.l.b16 %v129
    %v169 = vunpack.c.l.b16 %v130
    %v170 = vunpack.c.l.b16 %v131
    %v171 = vunpack.c.l.b16 %v132
    %v172 = vunpack.c.l.b16 %v133
    %v173 = vpack.c.b16 %v158, %v157
    %v174 = vpack.c.b16 %v160, %v159
    %v175 = vpack.c.b16 %v162, %v161
    %v176 = vpack.c.b16 %v164, %v163
    %v177 = vpack.c.b16 %v166, %v165
    %v178 = vpack.c.b16 %v168, %v167
    %v179 = vpack.c.b16 %v170, %v169
    %v180 = vpack.c.b16 %v172, %v171
    %189 = vmatprep.subr.bf16.mxu0 0
    %190 = vmatpush1.bf16.msra.mxu0 %v180
    %191 = vmatprep.subr.bf16.mxu0 0
    %192 = vmatpush1.bf16.msra.mxu0 %v179
    %193 = vmatprep.subr.bf16.mxu0 0
    %194 = vmatpush1.bf16.msra.mxu0 %v178
    %195 = vmatprep.subr.bf16.mxu0 0
    %196 = vmatpush1.bf16.msra.mxu0 %v177
    %197 = vmatprep.subr.bf16.mxu0 0
    %198 = vmatpush1.bf16.msra.mxu0 %v176
    %199 = vmatprep.subr.bf16.mxu0 0
    %200 = vmatpush1.bf16.msra.mxu0 %v175
    %201 = vmatprep.subr.bf16.mxu0 0
    %202 = vmatpush1.bf16.msra.mxu0 %v174
    %203 = vmatprep.subr.bf16.mxu0 0
    %204 = vmatpush1.bf16.msra.mxu0 %v173
    %205 = vmatprep.subr.bf16.mxu0 0
    %206 = vmatpush2.bf16.msra.mxu0 0
    %207 = vmatprep.subr.bf16.mxu0 0
    %208 = vmatpush2.bf16.msra.mxu0 0
    %209 = vmatprep.subr.bf16.mxu0 0
    %210 = vmatpush2.bf16.msra.mxu0 0
    %211 = vmatprep.subr.bf16.mxu0 0
    %212 = vmatpush2.bf16.msra.mxu0 0
    %213 = vmatprep.subr.bf16.mxu0 0
    %214 = vmatpush2.bf16.msra.mxu0 0
    %215 = vmatprep.subr.bf16.mxu0 0
    %216 = vmatpush2.bf16.msra.mxu0 0
    %217 = vmatprep.subr.bf16.mxu0 0
    %218 = vmatpush2.bf16.msra.mxu0 0
    %219 = vmatprep.subr.bf16.mxu0 0
    %220 = vmatpush2.bf16.msra.mxu0 0
    %221 = vmatprep.mubr.bf16.mxu0 0
    %222 = vmatmul.mubr.bf16.gmra.mxu0 %v117
    %v223 = vpop.f32.mrf.mxu0
    %v224 = vadd.f32 %v139, %v223
    %v225 = vpop.f32.mrf.mxu0
    %v226 = vpop.f32.mrf.mxu0
    %v227 = vadd.f32 %v139, %v226
    %v228 = vpop.f32.mrf.mxu0
    %229 = vdwg.mxu0
    %v230 = vmul.f32 %v224, 0.5
    %v231 = vmul.f32 %v227, 0.5
    %v232 = vmul.f32 %v224, 0.70710677
    %v233 = vmul.f32 %v227, 0.70710677
    %v234 = verf.f32.pop %v232
    %v235 = verf.f32.pop %v233
    %v236 = vadd.f32 %v234, 1.0
    %v237 = vadd.f32 %v235, 1.0
    %v238 = vmul.f32 %v230, %v236
    %v239 = vmul.f32 %v231, %v237
    %v240 = vpack.c.bf16 %v239, %v238
    %v241 = vld [vmem:[#allocation7] sm:$0xf]
    %v242 = vld [vmem:[#allocation7 + $0x4] sm:$0xf]
    %v243 = vld [vmem:[#allocation7 + $0x8] sm:$0xf]
    %v244 = vld [vmem:[#allocation7 + $0xc] sm:$0xf]
    %v245 = vld [vmem:[#allocation7 + $0x10] sm:$0xf]
    %v246 = vld [vmem:[#allocation7 + $0x14] sm:$0xf]
    %v247 = vld [vmem:[#allocation7 + $0x18] sm:$0xf]
    %v248 = vld [vmem:[#allocation7 + $0x1c] sm:$0xf]
    %v249 = vld [vmem:[#allocation7 + $0x20] sm:$0xf]
    %v250 = vld [vmem:[#allocation7 + $0x24] sm:$0xf]
    %v251 = vld [vmem:[#allocation7 + $0x28] sm:$0xf]
    %v252 = vld [vmem:[#allocation7 + $0x2c] sm:$0xf]
    %v253 = vld [vmem:[#allocation7 + $0x30] sm:$0xf]
    %v254 = vld [vmem:[#allocation7 + $0x34] sm:$0xf]
    %v255 = vld [vmem:[#allocation7 + $0x38] sm:$0xf]
    %v256 = vld [vmem:[#allocation7 + $0x3c] sm:$0xf]
    %v257 = vld [vmem:[%s6] sm:$0x1]
    %v259 = vlaneseq
    %v260 = vshrl.u32 %v259, 7
    %v261 = vsub.s32 0, %v260
    %v262 = vrot.slane %v257, %v261
    %v280 = vunpack.c.l.b16 %v241
    %v281 = vunpack.c.l.b16 %v242
    %v282 = vunpack.c.l.b16 %v243
    %v283 = vunpack.c.l.b16 %v244
    %v284 = vunpack.c.l.b16 %v245
    %v285 = vunpack.c.l.b16 %v246
    %v286 = vunpack.c.l.b16 %v247
    %v287 = vunpack.c.l.b16 %v248
    %v288 = vunpack.c.l.b16 %v249
    %v289 = vunpack.c.l.b16 %v250
    %v290 = vunpack.c.l.b16 %v251
    %v291 = vunpack.c.l.b16 %v252
    %v292 = vunpack.c.l.b16 %v253
    %v293 = vunpack.c.l.b16 %v254
    %v294 = vunpack.c.l.b16 %v255
    %v295 = vunpack.c.l.b16 %v256
    %v296 = vpack.c.b16 %v281, %v280
    %v297 = vpack.c.b16 %v283, %v282
    %v298 = vpack.c.b16 %v285, %v284
    %v299 = vpack.c.b16 %v287, %v286
    %v300 = vpack.c.b16 %v289, %v288
    %v301 = vpack.c.b16 %v291, %v290
    %v302 = vpack.c.b16 %v293, %v292
    %v303 = vpack.c.b16 %v295, %v294
    %312 = vmatprep.subr.bf16.mxu0 0
    %313 = vmatpush1.bf16.msra.mxu0 %v303
    %314 = vmatprep.subr.bf16.mxu0 0
    %315 = vmatpush1.bf16.msra.mxu0 %v302
    %316 = vmatprep.subr.bf16.mxu0 0
    %317 = vmatpush1.bf16.msra.mxu0 %v301
    %318 = vmatprep.subr.bf16.mxu0 0
    %319 = vmatpush1.bf16.msra.mxu0 %v300
    %320 = vmatprep.subr.bf16.mxu0 0
    %321 = vmatpush1.bf16.msra.mxu0 %v299
    %322 = vmatprep.subr.bf16.mxu0 0
    %323 = vmatpush1.bf16.msra.mxu0 %v298
    %324 = vmatprep.subr.bf16.mxu0 0
    %325 = vmatpush1.bf16.msra.mxu0 %v297
    %326 = vmatprep.subr.bf16.mxu0 0
    %327 = vmatpush1.bf16.msra.mxu0 %v296
    %328 = vmatprep.subr.bf16.mxu0 0
    %329 = vmatpush2.bf16.msra.mxu0 0
    %330 = vmatprep.subr.bf16.mxu0 0
    %331 = vmatpush2.bf16.msra.mxu0 0
    %332 = vmatprep.subr.bf16.mxu0 0
    %333 = vmatpush2.bf16.msra.mxu0 0
    %334 = vmatprep.subr.bf16.mxu0 0
    %335 = vmatpush2.bf16.msra.mxu0 0
    %336 = vmatprep.subr.bf16.mxu0 0
    %337 = vmatpush2.bf16.msra.mxu0 0
    %338 = vmatprep.subr.bf16.mxu0 0
    %339 = vmatpush2.bf16.msra.mxu0 0
    %340 = vmatprep.subr.bf16.mxu0 0
    %341 = vmatpush2.bf16.msra.mxu0 0
    %342 = vmatprep.subr.bf16.mxu0 0
    %343 = vmatpush2.bf16.msra.mxu0 0
    %344 = vmatprep.mubr.bf16.mxu0 0
    %345 = vmatmul.mubr.bf16.gmra.mxu0 %v240
    %v346 = vpop.f32.mrf.mxu0
    %v347 = vadd.f32 %v262, %v346
    %v348 = vpop.f32.mrf.mxu0
    %v349 = vpop.f32.mrf.mxu0
    %v350 = vadd.f32 %v262, %v349
    %v351 = vpop.f32.mrf.mxu0
    %352 = vdwg.mxu0
    %v353 = vadd.f32 %v69, %v347
    %v354 = vadd.f32 %v70, %v350
    %355 = vst [vmem:[#allocation8] sm:$0xff] %v353
    %356 = vst [vmem:[#allocation8 + $0x8] sm:$0xff] %v354
    // Predicated region
    $region42: #{tpu_custom_call.1} parent=1 // pred_check
      _
    $region43: #{tpu_custom_call.1} parent=1 // pred_check_branch
      %358 = sbr.rel (0) target = $region45
    $region44: #{tpu_custom_call.1} parent=1 // pred_region
      %s360 = ssub.s32 256, 256
      %361 = vsyncadd [#allocation4], %s360
      %s362 = sshll.u32 [#allocation8], 4
      %s363 = int_to_ptr.vmem [resolvable:$true] %s362
      %368 = dma.vmem_to_hbm [thread:$0]  %s363, 256, %s7, [#allocation4], 128, 128, 8
    $region45: #{tpu_custom_call.1} parent=1 // pred_fallthru
      _
    // Predicated region
    $region46: #{tpu_custom_call.1} parent=1 // pred_check
      _
    $region47: #{tpu_custom_call.1} parent=1 // pred_check_branch
      %370 = sbr.rel (0) target = $region49
    $region48: #{tpu_custom_call.1} parent=1 // pred_region
      %371 = dma.done [#allocation4], 256
    $region49: #{tpu_custom_call.1} parent=1 // pred_fallthru
      _
    %372 = vsyncpa [#allocation3], 1
    %373 = vsyncpa [#allocation6], 1
    %374 = vsyncpa [#allocation4], 1

</llo_original>
